<compile_context>
chip_gen: v5e
topology: v5e:2x2
jax: 0.10.0
libtpu: 0.0.40
codegen_flags: <defaults>
</compile_context>

<pallas_src>
import jax
import jax.numpy as jnp
from jax.experimental import pallas as pl
from jax.experimental.pallas import tpu as pltpu


# ---------------------------------------------------------------------------
# Config (mirrors the config dict the PyTorch module would receive)
# ---------------------------------------------------------------------------
INPUT_SIZE = 9
HIDDEN_SIZE = 32
NUM_LAYERS = 2
HEAD_HIDDEN_SIZE = 32
PREDICTION_STEPS = 4
PREDICTION_TARGETS = ["target"]          # single target -> output_size = 1
OUTPUT_SIZE = len(PREDICTION_TARGETS)    # 1, so view(B, prediction_steps) is valid
USE_MULTI_TASK = False


# ---------------------------------------------------------------------------
# Pallas kernel: wavefront-fused 2-layer LSTM recurrence + MLP head (vreg resident)
# ---------------------------------------------------------------------------
def lstm_kernel(
    x_ref,                       # ((T+1)*BP, I) f32, last BP rows zero (virtual epilogue step)
    wx_ref,                      # (I, 8H)  bf16  layer-0 input weights in interleaved gate cols
    b8_ref,                      # (1, 8H)  f32   b0 / b1 interleaved (b = b_ih + b_hh)
    wr_ref,                      # (2H, 8H) bf16  fused recurrent weights [[whh0|wih1],[0|whh1]]
    wf1_ref, bf1_ref,            # head linear 1: (H, HH) bf16, (1, HH) f32
    wf2_ref, bf2_ref,            # head linear 2: (HH, S) bf16, (1, S) f32
    out_ref,                     # (BP, S) f32
):
    BP = out_ref.shape[0]
    H = wx_ref.shape[1] // 8
    H2 = 2 * H
    n_steps = x_ref.shape[0] // BP          # T + 1 (last step is the virtual epilogue)

    # ---- hoisted, loop-invariant values (stay in vregs) ----
    wr = wr_ref[...]                                                   # (2H, 8H) bf16
    keep_l0 = jax.lax.broadcasted_iota(jnp.int32, (BP, H2), 1) < H     # [h0 | h1] lane mask

    # Layer-0 input projection + both biases for ALL timesteps in one matmul / one broadcast.
    # Layer-1 columns of wx are zero, so those columns of xw are exactly b1.
    xw = (
        jnp.dot(x_ref[...].astype(jnp.bfloat16), wx_ref[...],
                preferred_element_type=jnp.float32)
        + b8_ref[...]
    )                                                                  # ((T+1)*BP, 8H)

    def packed_step(gates, c_packed):
        # gate cols: [i0 i1 | f0 f1 | g0 g1 | o0 o1]; packed lane layout [layer0 | layer1]
        sig = jax.nn.sigmoid(gates)
        i = sig[:, 0 * H2:1 * H2]
        f = sig[:, 1 * H2:2 * H2]
        g = jnp.tanh(gates[:, 2 * H2:3 * H2])
        o = sig[:, 3 * H2:4 * H2]
        c_new = f * c_packed + i * g
        h_new = o * jnp.tanh(c_new)
        return h_new, c_new

    # ---- prologue (s = 0): initial state is zero, so the recurrent matmul is skipped; the
    # layer-1 half of the result corresponds to the meaningless step "-1" and is masked back
    # to the zero initial state. ----
    h, c = packed_step(xw[0:BP, :], jnp.zeros((BP, H2), jnp.float32))
    h = jnp.where(keep_l0, h, 0.0)
    c = jnp.where(keep_l0, c, 0.0)

    # ---- wavefront recurrence, fully unrolled (n_steps-1 = T fused steps).
    # Step s consumes xw row-block s and produces [h0(s) | h1(s-1)]; the final (virtual,
    # zero-input) step s = T produces h1(T-1), which is all the head needs. ----
    for s in range(1, n_steps):
        gates = xw[s * BP:(s + 1) * BP, :] + jnp.dot(
            h.astype(jnp.bfloat16), wr, preferred_element_type=jnp.float32)
        h, c = packed_step(gates, c)

    # ---- MLP head on the last timestep of the top layer: h1(T-1) = lanes [H, 2H) ----
    h1 = h[:, H:H2]
    hid = jnp.dot(h1.astype(jnp.bfloat16), wf1_ref[...],
                  preferred_element_type=jnp.float32) + bf1_ref[...]
    hid = jnp.maximum(hid, 0.0)                                        # ReLU
    out_ref[...] = jnp.dot(hid.astype(jnp.bfloat16), wf2_ref[...],
                           preferred_element_type=jnp.float32) + bf2_ref[...]


# ---------------------------------------------------------------------------
# Wrapper: weight packing (interleaved gate columns), batch padding, pallas_call
# ---------------------------------------------------------------------------
def _interleave_gate_cols(a, b):
    """[a_i b_i a_f b_f a_g b_g a_o b_o] from two (…, 4H) gate-column blocks."""
    H = a.shape[-1] // 4
    parts = []
    for k in range(4):
        parts.append(a[..., k * H:(k + 1) * H])
        parts.append(b[..., k * H:(k + 1) * H])
    return jnp.concatenate(parts, axis=-1)


@jax.jit
def lstm_forward(x_btI, params):
    """x_btI: (B, T, I) batch_first, like the PyTorch module. Returns (B, prediction_steps)."""
    B, T, I = x_btI.shape
    H = HIDDEN_SIZE
    S = OUTPUT_SIZE * PREDICTION_STEPS

    # pad batch to the f32 sublane tile (8) so every per-step slice is an aligned (8, *) tile
    BP = ((B + 7) // 8) * 8
    x_pad = jnp.pad(x_btI.astype(jnp.float32), ((0, BP - B), (0, 0), (0, 0)))

    # time-major + one appended zero "virtual" timestep (uniform epilogue), flattened 2-D
    x_tb = jnp.concatenate(
        [jnp.transpose(x_pad, (1, 0, 2)), jnp.zeros((1, BP, I), jnp.float32)], axis=0)
    x2d = x_tb.reshape((T + 1) * BP, I)                                # ((T+1)*BP, I)

    # interleaved gate-column weight packing
    wx = _interleave_gate_cols(params["wih0"], jnp.zeros_like(params["wih0"]))   # (I, 8H)
    b8 = _interleave_gate_cols(params["b0"], params["b1"])                       # (1, 8H)
    wr = jnp.concatenate(
        [_interleave_gate_cols(params["whh0"], params["wih1"]),                  # rows for h0
         _interleave_gate_cols(jnp.zeros_like(params["whh1"]), params["whh1"])],  # rows for h1
        axis=0)                                                                  # (2H, 8H)

    bf16 = jnp.bfloat16
    vmem = pl.BlockSpec(memory_space=pltpu.MemorySpace.VMEM)

    out = pl.pallas_call(
        lstm_kernel,
        out_shape=jax.ShapeDtypeStruct((BP, S), jnp.float32),
        in_specs=[vmem] * 8,
        out_specs=vmem,
    )(
        x2d,
        wx.astype(bf16), b8,
        wr.astype(bf16),
        params["wf1"].astype(bf16), params["bf1"],
        params["wf2"].astype(bf16), params["bf2"],
    )
    # drop batch padding; output.view(batch_size, prediction_steps)  (output_size == 1)
    return out[:B].reshape(B, PREDICTION_STEPS)


# ---------------------------------------------------------------------------
# Deterministic parameter init (nn.LSTM / nn.Linear shapes, stored pre-transposed)
# and a pure-JAX reference for checking.
# ---------------------------------------------------------------------------
def init_params(key):
    H, I, HH = HIDDEN_SIZE, INPUT_SIZE, HEAD_HIDDEN_SIZE
    S = OUTPUT_SIZE * PREDICTION_STEPS
    ks = jax.random.split(key, 12)
    u = lambda k, shape, scale: jax.random.uniform(k, shape, jnp.float32, -scale, scale)
    s_lstm = 1.0 / jnp.sqrt(H)
    return {
        # layer 0: W_ih (4H, I) stored transposed (I, 4H); combined bias b_ih + b_hh
        "wih0": u(ks[0], (I, 4 * H), s_lstm),
        "whh0": u(ks[1], (H, 4 * H), s_lstm),
        "b0":   u(ks[2], (1, 4 * H), s_lstm) + u(ks[3], (1, 4 * H), s_lstm),
        # layer 1
        "wih1": u(ks[4], (H, 4 * H), s_lstm),
        "whh1": u(ks[5], (H, 4 * H), s_lstm),
        "b1":   u(ks[6], (1, 4 * H), s_lstm) + u(ks[7], (1, 4 * H), s_lstm),
        # head: Linear(H, HH) then Linear(HH, S), stored transposed
        "wf1":  u(ks[8], (H, HH), 1.0 / jnp.sqrt(H)),
        "bf1":  u(ks[9], (1, HH), 1.0 / jnp.sqrt(H)),
        "wf2":  u(ks[10], (HH, S), 1.0 / jnp.sqrt(HH)),
        "bf2":  u(ks[11], (1, S), 1.0 / jnp.sqrt(HH)),
    }


def reference_forward(x_btI, params, matmul_dtype=jnp.float32):
    """Pure-JAX reference. matmul_dtype=bfloat16 mirrors the kernel's MXU operand cast
    (accumulation is always f32)."""
    B, T, I = x_btI.shape
    H = HIDDEN_SIZE
    hp = jax.lax.Precision.HIGHEST

    def dot(a, b):
        return jnp.dot(a.astype(matmul_dtype), b.astype(matmul_dtype),
                       precision=hp, preferred_element_type=jnp.float32)

    def cell(x_t, h, c, wih, whh, b):
        g = dot(x_t, wih) + dot(h, whh) + b
        i = jax.nn.sigmoid(g[:, 0 * H:1 * H])
        f = jax.nn.sigmoid(g[:, 1 * H:2 * H])
        gg = jnp.tanh(g[:, 2 * H:3 * H])
        o = jax.nn.sigmoid(g[:, 3 * H:4 * H])
        c_new = f * c + i * gg
        return o * jnp.tanh(c_new), c_new

    h0 = c0 = h1 = c1 = jnp.zeros((B, H), jnp.float32)
    for t in range(T):
        h0, c0 = cell(x_btI[:, t, :], h0, c0, params["wih0"], params["whh0"], params["b0"])
        h1, c1 = cell(h0, h1, c1, params["wih1"], params["whh1"], params["b1"])
    hid = jnp.maximum(dot(h1, params["wf1"]) + params["bf1"], 0.0)
    out = dot(hid, params["wf2"]) + params["bf2"]
    return out.reshape(B, PREDICTION_STEPS)


if __name__ == "__main__":
    key = jax.random.PRNGKey(0)
    k_x, k_p = jax.random.split(key)

    B, T = 2, 8
    x = jax.random.normal(k_x, (B, T, INPUT_SIZE), jnp.float32)
    params = init_params(k_p)

    out = jax.block_until_ready(lstm_forward(x, params))
    assert out.shape == (B, PREDICTION_STEPS), out.shape

    # tight structural check vs a reference that mirrors the kernel's bf16 matmul operands
    ref_bf16 = reference_forward(x, params, jnp.bfloat16)
    assert jnp.allclose(out, ref_bf16, atol=2e-3, rtol=2e-3), (out, ref_bf16)

    # sanity check vs the full-f32 reference (bounds the bf16-operand quantization error)
    ref_f32 = reference_forward(x, params, jnp.float32)
    assert jnp.allclose(out, ref_f32, atol=5e-2, rtol=5e-2), (out, ref_f32)

    print("KERNEL_OK")
</pallas_src>

<mosaic_0001>
module attributes {stable_mosaic.version = 11 : i64} {
  func.func @lstm_kernel(%arg0: memref<72x9xf32, #tpu.memory_space<vmem>>, %arg1: memref<9x256xbf16, #tpu.memory_space<vmem>>, %arg2: memref<1x256xf32, #tpu.memory_space<vmem>>, %arg3: memref<64x256xbf16, #tpu.memory_space<vmem>>, %arg4: memref<32x32xbf16, #tpu.memory_space<vmem>>, %arg5: memref<1x32xf32, #tpu.memory_space<vmem>>, %arg6: memref<32x4xbf16, #tpu.memory_space<vmem>>, %arg7: memref<1x4xf32, #tpu.memory_space<vmem>>, %arg8: memref<8x4xf32, #tpu.memory_space<vmem>>) attributes {dimension_semantics = [], scalar_prefetch = 0 : i64, scratch_operands = 0 : i64, tpu.core_type = #tpu.core_type<tc>} {
    %c0 = arith.constant 0 : index
    %c0_0 = arith.constant 0 : index
    %0 = vector.load %arg3[%c0, %c0_0] : memref<64x256xbf16, #tpu.memory_space<vmem>>, vector<64x256xbf16>
    %1 = tpu.iota {dimensions = array<i32: 1>} : vector<8x64xi32>
    %c32_i32 = arith.constant 32 : i32
    %2 = vector.broadcast %c32_i32 : i32 to vector<8x64xi32>
    %3 = arith.cmpi slt, %1, %2 : vector<8x64xi32>
    %c0_1 = arith.constant 0 : index
    %c0_2 = arith.constant 0 : index
    %4 = vector.load %arg0[%c0_1, %c0_2] : memref<72x9xf32, #tpu.memory_space<vmem>>, vector<72x9xf32>
    %5 = arith.truncf %4 : vector<72x9xf32> to vector<72x9xbf16>
    %c0_3 = arith.constant 0 : index
    %c0_4 = arith.constant 0 : index
    %6 = vector.load %arg1[%c0_3, %c0_4] : memref<9x256xbf16, #tpu.memory_space<vmem>>, vector<9x256xbf16>
    %cst = arith.constant dense<0.000000e+00> : vector<72x256xf32>
    %7 = tpu.matmul %5, %6, %cst {dimension_numbers = #tpu.dot_dimension_numbers<[1], [0], [0], [1], [0, 0, 1, 1], [], []>} : vector<72x9xbf16>, vector<9x256xbf16>, vector<72x256xf32> -> vector<72x256xf32>
    %c0_5 = arith.constant 0 : index
    %c0_6 = arith.constant 0 : index
    %8 = vector.load %arg2[%c0_5, %c0_6] : memref<1x256xf32, #tpu.memory_space<vmem>>, vector<1x256xf32>
    %9 = vector.broadcast %8 : vector<1x256xf32> to vector<72x256xf32>
    %10 = arith.addf %7, %9 : vector<72x256xf32>
    %11 = vector.extract_strided_slice %10 {offsets = [0, 0], sizes = [8, 256], strides = [1, 1]} : vector<72x256xf32> to vector<8x256xf32>
    %cst_7 = arith.constant 0.000000e+00 : f32
    %12 = vector.broadcast %cst_7 : f32 to vector<8x64xf32>
    %13 = arith.negf %11 : vector<8x256xf32>
    %14 = math.exp %13 : vector<8x256xf32>
    %cst_8 = arith.constant 1.000000e+00 : f32
    %15 = vector.broadcast %cst_8 : f32 to vector<8x256xf32>
    %16 = arith.addf %15, %14 : vector<8x256xf32>
    %17 = arith.divf %15, %16 : vector<8x256xf32>
    %18 = vector.extract_strided_slice %17 {offsets = [0, 0], sizes = [8, 64], strides = [1, 1]} : vector<8x256xf32> to vector<8x64xf32>
    %19 = vector.extract_strided_slice %17 {offsets = [0, 64], sizes = [8, 64], strides = [1, 1]} : vector<8x256xf32> to vector<8x64xf32>
    %20 = vector.extract_strided_slice %11 {offsets = [0, 128], sizes = [8, 64], strides = [1, 1]} : vector<8x256xf32> to vector<8x64xf32>
    %21 = math.tanh %20 : vector<8x64xf32>
    %22 = vector.extract_strided_slice %17 {offsets = [0, 192], sizes = [8, 64], strides = [1, 1]} : vector<8x256xf32> to vector<8x64xf32>
    %23 = arith.mulf %19, %12 : vector<8x64xf32>
    %24 = arith.mulf %18, %21 : vector<8x64xf32>
    %25 = arith.addf %23, %24 : vector<8x64xf32>
    %26 = math.tanh %25 : vector<8x64xf32>
    %27 = arith.mulf %22, %26 : vector<8x64xf32>
    %cst_9 = arith.constant 0.000000e+00 : f32
    %28 = vector.broadcast %cst_9 : f32 to vector<8x64xf32>
    %29 = arith.select %3, %27, %28 : vector<8x64xi1>, vector<8x64xf32>
    %cst_10 = arith.constant 0.000000e+00 : f32
    %30 = vector.broadcast %cst_10 : f32 to vector<8x64xf32>
    %31 = arith.select %3, %25, %30 : vector<8x64xi1>, vector<8x64xf32>
    %32 = vector.extract_strided_slice %10 {offsets = [8, 0], sizes = [8, 256], strides = [1, 1]} : vector<72x256xf32> to vector<8x256xf32>
    %33 = arith.truncf %29 : vector<8x64xf32> to vector<8x64xbf16>
    %cst_11 = arith.constant dense<0.000000e+00> : vector<8x256xf32>
    %34 = tpu.matmul %33, %0, %cst_11 {dimension_numbers = #tpu.dot_dimension_numbers<[1], [0], [0], [1], [0, 0, 1, 1], [], []>} : vector<8x64xbf16>, vector<64x256xbf16>, vector<8x256xf32> -> vector<8x256xf32>
    %35 = arith.addf %32, %34 : vector<8x256xf32>
    %36 = arith.negf %35 : vector<8x256xf32>
    %37 = math.exp %36 : vector<8x256xf32>
    %cst_12 = arith.constant 1.000000e+00 : f32
    %38 = vector.broadcast %cst_12 : f32 to vector<8x256xf32>
    %39 = arith.addf %38, %37 : vector<8x256xf32>
    %40 = arith.divf %38, %39 : vector<8x256xf32>
    %41 = vector.extract_strided_slice %40 {offsets = [0, 0], sizes = [8, 64], strides = [1, 1]} : vector<8x256xf32> to vector<8x64xf32>
    %42 = vector.extract_strided_slice %40 {offsets = [0, 64], sizes = [8, 64], strides = [1, 1]} : vector<8x256xf32> to vector<8x64xf32>
    %43 = vector.extract_strided_slice %35 {offsets = [0, 128], sizes = [8, 64], strides = [1, 1]} : vector<8x256xf32> to vector<8x64xf32>
    %44 = math.tanh %43 : vector<8x64xf32>
    %45 = vector.extract_strided_slice %40 {offsets = [0, 192], sizes = [8, 64], strides = [1, 1]} : vector<8x256xf32> to vector<8x64xf32>
    %46 = arith.mulf %42, %31 : vector<8x64xf32>
    %47 = arith.mulf %41, %44 : vector<8x64xf32>
    %48 = arith.addf %46, %47 : vector<8x64xf32>
    %49 = math.tanh %48 : vector<8x64xf32>
    %50 = arith.mulf %45, %49 : vector<8x64xf32>
    %51 = vector.extract_strided_slice %10 {offsets = [16, 0], sizes = [8, 256], strides = [1, 1]} : vector<72x256xf32> to vector<8x256xf32>
    %52 = arith.truncf %50 : vector<8x64xf32> to vector<8x64xbf16>
    %cst_13 = arith.constant dense<0.000000e+00> : vector<8x256xf32>
    %53 = tpu.matmul %52, %0, %cst_13 {dimension_numbers = #tpu.dot_dimension_numbers<[1], [0], [0], [1], [0, 0, 1, 1], [], []>} : vector<8x64xbf16>, vector<64x256xbf16>, vector<8x256xf32> -> vector<8x256xf32>
    %54 = arith.addf %51, %53 : vector<8x256xf32>
    %55 = arith.negf %54 : vector<8x256xf32>
    %56 = math.exp %55 : vector<8x256xf32>
    %cst_14 = arith.constant 1.000000e+00 : f32
    %57 = vector.broadcast %cst_14 : f32 to vector<8x256xf32>
    %58 = arith.addf %57, %56 : vector<8x256xf32>
    %59 = arith.divf %57, %58 : vector<8x256xf32>
    %60 = vector.extract_strided_slice %59 {offsets = [0, 0], sizes = [8, 64], strides = [1, 1]} : vector<8x256xf32> to vector<8x64xf32>
    %61 = vector.extract_strided_slice %59 {offsets = [0, 64], sizes = [8, 64], strides = [1, 1]} : vector<8x256xf32> to vector<8x64xf32>
    %62 = vector.extract_strided_slice %54 {offsets = [0, 128], sizes = [8, 64], strides = [1, 1]} : vector<8x256xf32> to vector<8x64xf32>
    %63 = math.tanh %62 : vector<8x64xf32>
    %64 = vector.extract_strided_slice %59 {offsets = [0, 192], sizes = [8, 64], strides = [1, 1]} : vector<8x256xf32> to vector<8x64xf32>
    %65 = arith.mulf %61, %48 : vector<8x64xf32>
    %66 = arith.mulf %60, %63 : vector<8x64xf32>
    %67 = arith.addf %65, %66 : vector<8x64xf32>
    %68 = math.tanh %67 : vector<8x64xf32>
    %69 = arith.mulf %64, %68 : vector<8x64xf32>
    %70 = vector.extract_strided_slice %10 {offsets = [24, 0], sizes = [8, 256], strides = [1, 1]} : vector<72x256xf32> to vector<8x256xf32>
    %71 = arith.truncf %69 : vector<8x64xf32> to vector<8x64xbf16>
    %cst_15 = arith.constant dense<0.000000e+00> : vector<8x256xf32>
    %72 = tpu.matmul %71, %0, %cst_15 {dimension_numbers = #tpu.dot_dimension_numbers<[1], [0], [0], [1], [0, 0, 1, 1], [], []>} : vector<8x64xbf16>, vector<64x256xbf16>, vector<8x256xf32> -> vector<8x256xf32>
    %73 = arith.addf %70, %72 : vector<8x256xf32>
    %74 = arith.negf %73 : vector<8x256xf32>
    %75 = math.exp %74 : vector<8x256xf32>
    %cst_16 = arith.constant 1.000000e+00 : f32
    %76 = vector.broadcast %cst_16 : f32 to vector<8x256xf32>
    %77 = arith.addf %76, %75 : vector<8x256xf32>
    %78 = arith.divf %76, %77 : vector<8x256xf32>
    %79 = vector.extract_strided_slice %78 {offsets = [0, 0], sizes = [8, 64], strides = [1, 1]} : vector<8x256xf32> to vector<8x64xf32>
    %80 = vector.extract_strided_slice %78 {offsets = [0, 64], sizes = [8, 64], strides = [1, 1]} : vector<8x256xf32> to vector<8x64xf32>
    %81 = vector.extract_strided_slice %73 {offsets = [0, 128], sizes = [8, 64], strides = [1, 1]} : vector<8x256xf32> to vector<8x64xf32>
    %82 = math.tanh %81 : vector<8x64xf32>
    %83 = vector.extract_strided_slice %78 {offsets = [0, 192], sizes = [8, 64], strides = [1, 1]} : vector<8x256xf32> to vector<8x64xf32>
    %84 = arith.mulf %80, %67 : vector<8x64xf32>
    %85 = arith.mulf %79, %82 : vector<8x64xf32>
    %86 = arith.addf %84, %85 : vector<8x64xf32>
    %87 = math.tanh %86 : vector<8x64xf32>
    %88 = arith.mulf %83, %87 : vector<8x64xf32>
    %89 = vector.extract_strided_slice %10 {offsets = [32, 0], sizes = [8, 256], strides = [1, 1]} : vector<72x256xf32> to vector<8x256xf32>
    %90 = arith.truncf %88 : vector<8x64xf32> to vector<8x64xbf16>
    %cst_17 = arith.constant dense<0.000000e+00> : vector<8x256xf32>
    %91 = tpu.matmul %90, %0, %cst_17 {dimension_numbers = #tpu.dot_dimension_numbers<[1], [0], [0], [1], [0, 0, 1, 1], [], []>} : vector<8x64xbf16>, vector<64x256xbf16>, vector<8x256xf32> -> vector<8x256xf32>
    %92 = arith.addf %89, %91 : vector<8x256xf32>
    %93 = arith.negf %92 : vector<8x256xf32>
    %94 = math.exp %93 : vector<8x256xf32>
    %cst_18 = arith.constant 1.000000e+00 : f32
    %95 = vector.broadcast %cst_18 : f32 to vector<8x256xf32>
    %96 = arith.addf %95, %94 : vector<8x256xf32>
    %97 = arith.divf %95, %96 : vector<8x256xf32>
    %98 = vector.extract_strided_slice %97 {offsets = [0, 0], sizes = [8, 64], strides = [1, 1]} : vector<8x256xf32> to vector<8x64xf32>
    %99 = vector.extract_strided_slice %97 {offsets = [0, 64], sizes = [8, 64], strides = [1, 1]} : vector<8x256xf32> to vector<8x64xf32>
    %100 = vector.extract_strided_slice %92 {offsets = [0, 128], sizes = [8, 64], strides = [1, 1]} : vector<8x256xf32> to vector<8x64xf32>
    %101 = math.tanh %100 : vector<8x64xf32>
    %102 = vector.extract_strided_slice %97 {offsets = [0, 192], sizes = [8, 64], strides = [1, 1]} : vector<8x256xf32> to vector<8x64xf32>
    %103 = arith.mulf %99, %86 : vector<8x64xf32>
    %104 = arith.mulf %98, %101 : vector<8x64xf32>
    %105 = arith.addf %103, %104 : vector<8x64xf32>
    %106 = math.tanh %105 : vector<8x64xf32>
    %107 = arith.mulf %102, %106 : vector<8x64xf32>
    %108 = vector.extract_strided_slice %10 {offsets = [40, 0], sizes = [8, 256], strides = [1, 1]} : vector<72x256xf32> to vector<8x256xf32>
    %109 = arith.truncf %107 : vector<8x64xf32> to vector<8x64xbf16>
    %cst_19 = arith.constant dense<0.000000e+00> : vector<8x256xf32>
    %110 = tpu.matmul %109, %0, %cst_19 {dimension_numbers = #tpu.dot_dimension_numbers<[1], [0], [0], [1], [0, 0, 1, 1], [], []>} : vector<8x64xbf16>, vector<64x256xbf16>, vector<8x256xf32> -> vector<8x256xf32>
    %111 = arith.addf %108, %110 : vector<8x256xf32>
    %112 = arith.negf %111 : vector<8x256xf32>
    %113 = math.exp %112 : vector<8x256xf32>
    %cst_20 = arith.constant 1.000000e+00 : f32
    %114 = vector.broadcast %cst_20 : f32 to vector<8x256xf32>
    %115 = arith.addf %114, %113 : vector<8x256xf32>
    %116 = arith.divf %114, %115 : vector<8x256xf32>
    %117 = vector.extract_strided_slice %116 {offsets = [0, 0], sizes = [8, 64], strides = [1, 1]} : vector<8x256xf32> to vector<8x64xf32>
    %118 = vector.extract_strided_slice %116 {offsets = [0, 64], sizes = [8, 64], strides = [1, 1]} : vector<8x256xf32> to vector<8x64xf32>
    %119 = vector.extract_strided_slice %111 {offsets = [0, 128], sizes = [8, 64], strides = [1, 1]} : vector<8x256xf32> to vector<8x64xf32>
    %120 = math.tanh %119 : vector<8x64xf32>
    %121 = vector.extract_strided_slice %116 {offsets = [0, 192], sizes = [8, 64], strides = [1, 1]} : vector<8x256xf32> to vector<8x64xf32>
    %122 = arith.mulf %118, %105 : vector<8x64xf32>
    %123 = arith.mulf %117, %120 : vector<8x64xf32>
    %124 = arith.addf %122, %123 : vector<8x64xf32>
    %125 = math.tanh %124 : vector<8x64xf32>
    %126 = arith.mulf %121, %125 : vector<8x64xf32>
    %127 = vector.extract_strided_slice %10 {offsets = [48, 0], sizes = [8, 256], strides = [1, 1]} : vector<72x256xf32> to vector<8x256xf32>
    %128 = arith.truncf %126 : vector<8x64xf32> to vector<8x64xbf16>
    %cst_21 = arith.constant dense<0.000000e+00> : vector<8x256xf32>
    %129 = tpu.matmul %128, %0, %cst_21 {dimension_numbers = #tpu.dot_dimension_numbers<[1], [0], [0], [1], [0, 0, 1, 1], [], []>} : vector<8x64xbf16>, vector<64x256xbf16>, vector<8x256xf32> -> vector<8x256xf32>
    %130 = arith.addf %127, %129 : vector<8x256xf32>
    %131 = arith.negf %130 : vector<8x256xf32>
    %132 = math.exp %131 : vector<8x256xf32>
    %cst_22 = arith.constant 1.000000e+00 : f32
    %133 = vector.broadcast %cst_22 : f32 to vector<8x256xf32>
    %134 = arith.addf %133, %132 : vector<8x256xf32>
    %135 = arith.divf %133, %134 : vector<8x256xf32>
    %136 = vector.extract_strided_slice %135 {offsets = [0, 0], sizes = [8, 64], strides = [1, 1]} : vector<8x256xf32> to vector<8x64xf32>
    %137 = vector.extract_strided_slice %135 {offsets = [0, 64], sizes = [8, 64], strides = [1, 1]} : vector<8x256xf32> to vector<8x64xf32>
    %138 = vector.extract_strided_slice %130 {offsets = [0, 128], sizes = [8, 64], strides = [1, 1]} : vector<8x256xf32> to vector<8x64xf32>
    %139 = math.tanh %138 : vector<8x64xf32>
    %140 = vector.extract_strided_slice %135 {offsets = [0, 192], sizes = [8, 64], strides = [1, 1]} : vector<8x256xf32> to vector<8x64xf32>
    %141 = arith.mulf %137, %124 : vector<8x64xf32>
    %142 = arith.mulf %136, %139 : vector<8x64xf32>
    %143 = arith.addf %141, %142 : vector<8x64xf32>
    %144 = math.tanh %143 : vector<8x64xf32>
    %145 = arith.mulf %140, %144 : vector<8x64xf32>
    %146 = vector.extract_strided_slice %10 {offsets = [56, 0], sizes = [8, 256], strides = [1, 1]} : vector<72x256xf32> to vector<8x256xf32>
    %147 = arith.truncf %145 : vector<8x64xf32> to vector<8x64xbf16>
    %cst_23 = arith.constant dense<0.000000e+00> : vector<8x256xf32>
    %148 = tpu.matmul %147, %0, %cst_23 {dimension_numbers = #tpu.dot_dimension_numbers<[1], [0], [0], [1], [0, 0, 1, 1], [], []>} : vector<8x64xbf16>, vector<64x256xbf16>, vector<8x256xf32> -> vector<8x256xf32>
    %149 = arith.addf %146, %148 : vector<8x256xf32>
    %150 = arith.negf %149 : vector<8x256xf32>
    %151 = math.exp %150 : vector<8x256xf32>
    %cst_24 = arith.constant 1.000000e+00 : f32
    %152 = vector.broadcast %cst_24 : f32 to vector<8x256xf32>
    %153 = arith.addf %152, %151 : vector<8x256xf32>
    %154 = arith.divf %152, %153 : vector<8x256xf32>
    %155 = vector.extract_strided_slice %154 {offsets = [0, 0], sizes = [8, 64], strides = [1, 1]} : vector<8x256xf32> to vector<8x64xf32>
    %156 = vector.extract_strided_slice %154 {offsets = [0, 64], sizes = [8, 64], strides = [1, 1]} : vector<8x256xf32> to vector<8x64xf32>
    %157 = vector.extract_strided_slice %149 {offsets = [0, 128], sizes = [8, 64], strides = [1, 1]} : vector<8x256xf32> to vector<8x64xf32>
    %158 = math.tanh %157 : vector<8x64xf32>
    %159 = vector.extract_strided_slice %154 {offsets = [0, 192], sizes = [8, 64], strides = [1, 1]} : vector<8x256xf32> to vector<8x64xf32>
    %160 = arith.mulf %156, %143 : vector<8x64xf32>
    %161 = arith.mulf %155, %158 : vector<8x64xf32>
    %162 = arith.addf %160, %161 : vector<8x64xf32>
    %163 = math.tanh %162 : vector<8x64xf32>
    %164 = arith.mulf %159, %163 : vector<8x64xf32>
    %165 = vector.extract_strided_slice %10 {offsets = [64, 0], sizes = [8, 256], strides = [1, 1]} : vector<72x256xf32> to vector<8x256xf32>
    %166 = arith.truncf %164 : vector<8x64xf32> to vector<8x64xbf16>
    %cst_25 = arith.constant dense<0.000000e+00> : vector<8x256xf32>
    %167 = tpu.matmul %166, %0, %cst_25 {dimension_numbers = #tpu.dot_dimension_numbers<[1], [0], [0], [1], [0, 0, 1, 1], [], []>} : vector<8x64xbf16>, vector<64x256xbf16>, vector<8x256xf32> -> vector<8x256xf32>
    %168 = arith.addf %165, %167 : vector<8x256xf32>
    %169 = arith.negf %168 : vector<8x256xf32>
    %170 = math.exp %169 : vector<8x256xf32>
    %cst_26 = arith.constant 1.000000e+00 : f32
    %171 = vector.broadcast %cst_26 : f32 to vector<8x256xf32>
    %172 = arith.addf %171, %170 : vector<8x256xf32>
    %173 = arith.divf %171, %172 : vector<8x256xf32>
    %174 = vector.extract_strided_slice %173 {offsets = [0, 0], sizes = [8, 64], strides = [1, 1]} : vector<8x256xf32> to vector<8x64xf32>
    %175 = vector.extract_strided_slice %173 {offsets = [0, 64], sizes = [8, 64], strides = [1, 1]} : vector<8x256xf32> to vector<8x64xf32>
    %176 = vector.extract_strided_slice %168 {offsets = [0, 128], sizes = [8, 64], strides = [1, 1]} : vector<8x256xf32> to vector<8x64xf32>
    %177 = math.tanh %176 : vector<8x64xf32>
    %178 = vector.extract_strided_slice %173 {offsets = [0, 192], sizes = [8, 64], strides = [1, 1]} : vector<8x256xf32> to vector<8x64xf32>
    %179 = arith.mulf %175, %162 : vector<8x64xf32>
    %180 = arith.mulf %174, %177 : vector<8x64xf32>
    %181 = arith.addf %179, %180 : vector<8x64xf32>
    %182 = math.tanh %181 : vector<8x64xf32>
    %183 = arith.mulf %178, %182 : vector<8x64xf32>
    %184 = vector.extract_strided_slice %183 {offsets = [0, 32], sizes = [8, 32], strides = [1, 1]} : vector<8x64xf32> to vector<8x32xf32>
    %185 = arith.truncf %184 : vector<8x32xf32> to vector<8x32xbf16>
    %c0_27 = arith.constant 0 : index
    %c0_28 = arith.constant 0 : index
    %186 = vector.load %arg4[%c0_27, %c0_28] : memref<32x32xbf16, #tpu.memory_space<vmem>>, vector<32x32xbf16>
    %cst_29 = arith.constant dense<0.000000e+00> : vector<8x32xf32>
    %187 = tpu.matmul %185, %186, %cst_29 {dimension_numbers = #tpu.dot_dimension_numbers<[1], [0], [0], [1], [0, 0, 1, 1], [], []>} : vector<8x32xbf16>, vector<32x32xbf16>, vector<8x32xf32> -> vector<8x32xf32>
    %c0_30 = arith.constant 0 : index
    %c0_31 = arith.constant 0 : index
    %188 = vector.load %arg5[%c0_30, %c0_31] : memref<1x32xf32, #tpu.memory_space<vmem>>, vector<1x32xf32>
    %189 = vector.broadcast %188 : vector<1x32xf32> to vector<8x32xf32>
    %190 = arith.addf %187, %189 : vector<8x32xf32>
    %cst_32 = arith.constant 0.000000e+00 : f32
    %191 = vector.broadcast %cst_32 : f32 to vector<8x32xf32>
    %192 = arith.maximumf %190, %191 : vector<8x32xf32>
    %193 = arith.truncf %192 : vector<8x32xf32> to vector<8x32xbf16>
    %c0_33 = arith.constant 0 : index
    %c0_34 = arith.constant 0 : index
    %194 = vector.load %arg6[%c0_33, %c0_34] : memref<32x4xbf16, #tpu.memory_space<vmem>>, vector<32x4xbf16>
    %cst_35 = arith.constant dense<0.000000e+00> : vector<8x4xf32>
    %195 = tpu.matmul %193, %194, %cst_35 {dimension_numbers = #tpu.dot_dimension_numbers<[1], [0], [0], [1], [0, 0, 1, 1], [], []>} : vector<8x32xbf16>, vector<32x4xbf16>, vector<8x4xf32> -> vector<8x4xf32>
    %c0_36 = arith.constant 0 : index
    %c0_37 = arith.constant 0 : index
    %196 = vector.load %arg7[%c0_36, %c0_37] : memref<1x4xf32, #tpu.memory_space<vmem>>, vector<1x4xf32>
    %197 = vector.broadcast %196 : vector<1x4xf32> to vector<8x4xf32>
    %198 = arith.addf %195, %197 : vector<8x4xf32>
    %c0_38 = arith.constant 0 : index
    %c0_39 = arith.constant 0 : index
    %199 = vector.load %arg8[%c0_38, %c0_39] : memref<8x4xf32, #tpu.memory_space<vmem>>, vector<8x4xf32>
    tpu.vector_store %arg8[%c0_38, %c0_39], %198 {strides = array<i32>} : memref<8x4xf32, #tpu.memory_space<vmem>>, vector<8x4xf32>,
    return
  }
}

</mosaic_0001>

<llo_original>
// kernel: lstm_forward.1
$region0: #{lstm_forward.1}
  #allocation0 [shape = 'u32[]', space=smem, size = 0x4, offset = 0x4, fixed_abs, tag = 'smem constant byte address 0x4 - core index']
  #allocation1 [shape = 'u32[72,128]{1,0:T(1,128)}', space=vmem, size = 0x9000, scoped, tag = 'internal scratch']
  %s0 = inlined_call_operand.vmem [shape: f32[72,9], index: 0, kind: input, shape index: {}]
  %s1 = inlined_call_operand.vmem [shape: bf16[9,256], index: 1, kind: input, shape index: {}]
  %s2 = inlined_call_operand.vmem [shape: f32[1,256], index: 2, kind: input, shape index: {}]
  %s3 = inlined_call_operand.vmem [shape: bf16[64,256], index: 3, kind: input, shape index: {}]
  %s4 = inlined_call_operand.vmem [shape: bf16[32,32], index: 4, kind: input, shape index: {}]
  %s5 = inlined_call_operand.vmem [shape: f32[1,32], index: 5, kind: input, shape index: {}]
  %s6 = inlined_call_operand.vmem [shape: bf16[32,4], index: 6, kind: input, shape index: {}]
  %s7 = inlined_call_operand.vmem [shape: f32[1,4], index: 7, kind: input, shape index: {}]
  %s8 = inlined_call_operand.vmem [shape: f32[8,4], index: 8, kind: output, shape index: {}]
  %s9 = sld [smem:[#allocation0]]
  $region42: #{lstm_forward.1} parent=0
    _
  %s11 = ssub.s32 1, %s9
  %s12 = scalar_select 0, %s11, %s9
  // Predicated region
  $region2: #{lstm_forward.1} parent=0 // pred_check
    _
  $region3: #{lstm_forward.1} parent=0 // pred_check_branch
    %14 = sbr.rel (0) target = $region5
  $region4: #{lstm_forward.1} parent=0 // pred_region
    _
  $region5: #{lstm_forward.1} parent=0 // pred_fallthru
    _
  // Predicated region
  $region6: #{lstm_forward.1} parent=0 // pred_check
    _
  $region7: #{lstm_forward.1} parent=0 // pred_check_branch
    %16 = sbr.rel (0) target = $region9
  $region8: #{lstm_forward.1} parent=0 // pred_region
    _
  $region9: #{lstm_forward.1} parent=0 // pred_fallthru
    _
  // Predicated region
  $region10: #{lstm_forward.1} parent=0 // pred_check
    _
  $region11: #{lstm_forward.1} parent=0 // pred_check_branch
    %18 = sbr.rel (0) target = $region13
  $region12: #{lstm_forward.1} parent=0 // pred_region
    _
  $region13: #{lstm_forward.1} parent=0 // pred_fallthru
    _
  // Predicated region
  $region14: #{lstm_forward.1} parent=0 // pred_check
    _
  $region15: #{lstm_forward.1} parent=0 // pred_check_branch
    %20 = sbr.rel (0) target = $region17
  $region16: #{lstm_forward.1} parent=0 // pred_region
    _
  $region17: #{lstm_forward.1} parent=0 // pred_fallthru
    _
  // Predicated region
  $region18: #{lstm_forward.1} parent=0 // pred_check
    _
  $region19: #{lstm_forward.1} parent=0 // pred_check_branch
    %22 = sbr.rel (0) target = $region21
  $region20: #{lstm_forward.1} parent=0 // pred_region
    _
  $region21: #{lstm_forward.1} parent=0 // pred_fallthru
    _
  // Predicated region
  $region22: #{lstm_forward.1} parent=0 // pred_check
    _
  $region23: #{lstm_forward.1} parent=0 // pred_check_branch
    %24 = sbr.rel (0) target = $region25
  $region24: #{lstm_forward.1} parent=0 // pred_region
    _
  $region25: #{lstm_forward.1} parent=0 // pred_fallthru
    _
  // Predicated region
  $region26: #{lstm_forward.1} parent=0 // pred_check
    _
  $region27: #{lstm_forward.1} parent=0 // pred_check_branch
    %26 = sbr.rel (0) target = $region29
  $region28: #{lstm_forward.1} parent=0 // pred_region
    _
  $region29: #{lstm_forward.1} parent=0 // pred_fallthru
    _
  // Predicated region
  $region30: #{lstm_forward.1} parent=0 // pred_check
    _
  $region31: #{lstm_forward.1} parent=0 // pred_check_branch
    %28 = sbr.rel (0) target = $region33
  $region32: #{lstm_forward.1} parent=0 // pred_region
    _
  $region33: #{lstm_forward.1} parent=0 // pred_fallthru
    _
  %v30 = vld [vmem:[%s3] sm:$0xff]
  %v31 = vld [vmem:[%s3 + $0x8] sm:$0xff]
  %v32 = vld [vmem:[%s3 + $0x10] sm:$0xff]
  %v33 = vld [vmem:[%s3 + $0x18] sm:$0xff]
  %v34 = vld [vmem:[%s3 + $0x20] sm:$0xff]
  %v35 = vld [vmem:[%s3 + $0x28] sm:$0xff]
  %v36 = vld [vmem:[%s3 + $0x30] sm:$0xff]
  %v37 = vld [vmem:[%s3 + $0x38] sm:$0xff]
  %v38 = vlaneseq
  %v39 = vand.u32 %v38, 127
  %vm40 = vcmp.lt.s32.totalorder %v39, 32
  %v41 = vld [vmem:[%s0] sm:$0xff]
  %v42 = vld [vmem:[%s0 + $0x8] sm:$0xff]
  %v43 = vld [vmem:[%s0 + $0x10] sm:$0xff]
  %v44 = vld [vmem:[%s0 + $0x18] sm:$0xff]
  %v45 = vld [vmem:[%s0 + $0x20] sm:$0xff]
  %v46 = vld [vmem:[%s0 + $0x28] sm:$0xff]
  %v47 = vld [vmem:[%s0 + $0x30] sm:$0xff]
  %v48 = vld [vmem:[%s0 + $0x38] sm:$0xff]
  %v49 = vld [vmem:[%s0 + $0x40] sm:$0xff]
  %v50 = vpack.c.bf16 %v42, %v41
  %v51 = vpack.c.bf16 %v44, %v43
  %v52 = vpack.c.bf16 %v46, %v45
  %v53 = vpack.c.bf16 %v48, %v47
  %v54 = vpack.c.bf16 %v49, %v49
  %v55 = vld [vmem:[%s1] sm:$0xff]
  %v56 = vld [vmem:[%s1 + $0x8] sm:$0x11]
  %v57 = vld [vmem:[%s2] sm:$0x3]
  %v59 = vperm.slane %v57, 0
  %v60 = vperm.slane %v57, 1
  %v65 = vunpack.c.l.b16 %v55
  %v66 = vunpack.c.h.b16 %v55
  %v67 = vunpack.c.l.b16 %v56
  %v68 = vunpack.c.h.b16 %v56
  %v69 = vpack.c.b16 %v67, %v65
  %v70 = vpack.c.b16 %v68, %v66
  %vm71 = vcmask 72704
  %v73 = vsel %vm71, %v50, 0
  %v76 = vsel %vm71, %v51, 0
  %v79 = vsel %vm71, %v52, 0
  %v82 = vsel %vm71, %v53, 0
  %v85 = vsel %vm71, %v54, 0
  %vm87 = vcmask 1043456
  %vm88 = vcmask 1044480
  %v89 = vsel %vm87, 4294967295, 65535
  %v90 = vsel %vm88, %v89, 0
  %v92 = vand.u32 %v69, %v90
  %v95 = vand.u32 %v70, %v90
  %97 = vmatpush.bf16.msra.mxu0 0
  %98 = vmatpush.bf16.msra.mxu0 0
  %99 = vmatpush.bf16.msra.mxu0 0
  %100 = vmatpush.bf16.msra.mxu0 0
  %101 = vmatpush.bf16.msra.mxu0 0
  %102 = vmatpush.bf16.msra.mxu0 0
  %103 = vmatpush.bf16.msra.mxu0 0
  %104 = vmatpush.bf16.msra.mxu0 %v92
  %105 = vmatmul.bf16.gmra.mxu0 %v73
  %v106 = vpop.f32.mrf.mxu0
  %v107 = vadd.f32 %v59, %v106
  %v108 = vpop.f32.mrf.mxu0
  %v109 = vadd.f32 %v59, %v108
  %110 = vmatmul.bf16.gmra.mxu0 %v76
  %v111 = vpop.f32.mrf.mxu0
  %v112 = vadd.f32 %v59, %v111
  %v113 = vpop.f32.mrf.mxu0
  %v114 = vadd.f32 %v59, %v113
  %115 = vmatmul.bf16.gmra.mxu0 %v79
  %v116 = vpop.f32.mrf.mxu0
  %v117 = vadd.f32 %v59, %v116
  %v118 = vpop.f32.mrf.mxu0
  %v119 = vadd.f32 %v59, %v118
  %120 = vmatmul.bf16.gmra.mxu0 %v82
  %v121 = vpop.f32.mrf.mxu0
  %v122 = vadd.f32 %v59, %v121
  %v123 = vpop.f32.mrf.mxu0
  %v124 = vadd.f32 %v59, %v123
  %125 = vmatmul.bf16.gmra.mxu0 %v85
  %v126 = vpop.f32.mrf.mxu0
  %v127 = vadd.f32 %v59, %v126
  %v128 = vpop.f32.mrf.mxu0
  %129 = vdwg.mxu0
  %130 = vmatpush.bf16.msra.mxu0 0
  %131 = vmatpush.bf16.msra.mxu0 0
  %132 = vmatpush.bf16.msra.mxu0 0
  %133 = vmatpush.bf16.msra.mxu0 0
  %134 = vmatpush.bf16.msra.mxu0 0
  %135 = vmatpush.bf16.msra.mxu0 0
  %136 = vmatpush.bf16.msra.mxu0 0
  %137 = vmatpush.bf16.msra.mxu0 %v95
  %138 = vmatmul.bf16.gmra.mxu0 %v73
  %v139 = vpop.f32.mrf.mxu0
  %v140 = vadd.f32 %v60, %v139
  %v141 = vpop.f32.mrf.mxu0
  %v142 = vadd.f32 %v60, %v141
  %143 = vmatmul.bf16.gmra.mxu0 %v76
  %v144 = vpop.f32.mrf.mxu0
  %v145 = vadd.f32 %v60, %v144
  %v146 = vpop.f32.mrf.mxu0
  %v147 = vadd.f32 %v60, %v146
  %148 = vmatmul.bf16.gmra.mxu0 %v79
  %v149 = vpop.f32.mrf.mxu0
  %v150 = vadd.f32 %v60, %v149
  %v151 = vpop.f32.mrf.mxu0
  %v152 = vadd.f32 %v60, %v151
  %153 = vmatmul.bf16.gmra.mxu0 %v82
  %v154 = vpop.f32.mrf.mxu0
  %v155 = vadd.f32 %v60, %v154
  %v156 = vpop.f32.mrf.mxu0
  %v157 = vadd.f32 %v60, %v156
  %158 = vmatmul.bf16.gmra.mxu0 %v85
  %v159 = vpop.f32.mrf.mxu0
  %v160 = vadd.f32 %v60, %v159
  %v161 = vpop.f32.mrf.mxu0
  %162 = vdwg.mxu0
  %v163 = vxor.u32 %v107, 2147483648
  %v164 = vxor.u32 %v140, 2147483648
  %v165 = vmul.f32 %v163, 1.442695
  %v166 = vpow.pop %v165
  %v167 = vmul.f32 %v164, 1.442695
  %v168 = vpow.pop %v167
  %v169 = vadd.f32 %v166, 1.0
  %v170 = vadd.f32 %v168, 1.0
  %v171 = vrcp.pop %v169
  %v172 = vmul.f32 %v169, %v171
  %v173 = vsub.f32 1.0, %v172
  %v174 = vmul.f32 %v171, %v173
  %v175 = vadd.f32 %v171, %v174
  %vm176 = vweird.f32 %v169
  %vm177 = vweird.f32 %v171
  %vm178 = vmor %vm176, %vm177
  %v179 = vsel %vm178, %v171, %v175
  %v180 = vand.u32 2147483647, %v169
  %vm181 = vcmp.eq.f32.partialorder %v180, 8.507059e+37
  %v182 = vand.u32 %v169, 2147483648
  %v183 = vor.u32 1.1754944e-38, %v182
  %v184 = vsel %vm181, %v183, %v179
  %v185 = vmul.f32 1.0, %v184
  %v186 = vrcp.pop %v170
  %v187 = vmul.f32 %v170, %v186
  %v188 = vsub.f32 1.0, %v187
  %v189 = vmul.f32 %v186, %v188
  %v190 = vadd.f32 %v186, %v189
  %vm191 = vweird.f32 %v170
  %vm192 = vweird.f32 %v186
  %vm193 = vmor %vm191, %vm192
  %v194 = vsel %vm193, %v186, %v190
  %v195 = vand.u32 2147483647, %v170
  %vm196 = vcmp.eq.f32.partialorder %v195, 8.507059e+37
  %v197 = vand.u32 %v170, 2147483648
  %v198 = vor.u32 1.1754944e-38, %v197
  %v199 = vsel %vm196, %v198, %v194
  %v200 = vmul.f32 1.0, %v199
  %v201 = vtanh.pop %v140
  %v202 = vmul.f32 %v185, 0.0
  %v203 = vmul.f32 %v185, %v201
  %205 = vrot.lane.b32.xlu0 %v203, 64
  %v206 = vpop.permute.xlu0 %205
  %v208 = vadd.f32 %v202, %v206
  %v209 = vtanh.pop %v208
  %v210 = vmul.f32 %v200, %v209
  %212 = vrot.lane.b32.xlu0 %v210, 64
  %v213 = vpop.permute.xlu0 %212
  %v215 = vsel %vm40, %v213, 0.0
  %217 = vrot.lane.b32.xlu0 %v208, 64
  %v218 = vpop.permute.xlu0 %217
  %v220 = vsel %vm40, %v218, 0.0
  %v221 = vpack.c.bf16 %v215, %v215
  %v230 = vunpack.c.l.b16 %v30
  %v231 = vunpack.c.h.b16 %v30
  %v232 = vunpack.c.l.b16 %v31
  %v233 = vunpack.c.h.b16 %v31
  %v234 = vunpack.c.l.b16 %v32
  %v235 = vunpack.c.h.b16 %v32
  %v236 = vunpack.c.l.b16 %v33
  %v237 = vunpack.c.h.b16 %v33
  %v238 = vunpack.c.l.b16 %v34
  %v239 = vunpack.c.h.b16 %v34
  %v240 = vunpack.c.l.b16 %v35
  %v241 = vunpack.c.h.b16 %v35
  %v242 = vunpack.c.l.b16 %v36
  %v243 = vunpack.c.h.b16 %v36
  %v244 = vunpack.c.l.b16 %v37
  %v245 = vunpack.c.h.b16 %v37
  %v246 = vpack.c.b16 %v232, %v230
  %v247 = vpack.c.b16 %v233, %v231
  %v248 = vpack.c.b16 %v236, %v234
  %v249 = vpack.c.b16 %v237, %v235
  %v250 = vpack.c.b16 %v240, %v238
  %v251 = vpack.c.b16 %v241, %v239
  %v252 = vpack.c.b16 %v244, %v242
  %v253 = vpack.c.b16 %v245, %v243
  %vm262 = vcmask 523264
  %v264 = vsel %vm262, %v221, 0
  %266 = vmatpush.bf16.msra.mxu0 0
  %267 = vmatpush.bf16.msra.mxu0 0
  %268 = vmatpush.bf16.msra.mxu0 0
  %269 = vmatpush.bf16.msra.mxu0 0
  %270 = vmatpush.bf16.msra.mxu0 %v252
  %271 = vmatpush.bf16.msra.mxu0 %v250
  %272 = vmatpush.bf16.msra.mxu0 %v248
  %273 = vmatpush.bf16.msra.mxu0 %v246
  %274 = vmatmul.bf16.gmra.mxu0 %v264
  %v275 = vpop.f32.mrf.mxu0
  %v276 = vadd.f32 0.0, %v275
  %v277 = vpop.f32.mrf.mxu0
  %278 = vdwg.mxu0
  %279 = vmatpush.bf16.msra.mxu0 0
  %280 = vmatpush.bf16.msra.mxu0 0
  %281 = vmatpush.bf16.msra.mxu0 0
  %282 = vmatpush.bf16.msra.mxu0 0
  %283 = vmatpush.bf16.msra.mxu0 %v253
  %284 = vmatpush.bf16.msra.mxu0 %v251
  %285 = vmatpush.bf16.msra.mxu0 %v249
  %286 = vmatpush.bf16.msra.mxu0 %v247
  %287 = vmatmul.bf16.gmra.mxu0 %v264
  %v288 = vpop.f32.mrf.mxu0
  %v289 = vadd.f32 0.0, %v288
  %v290 = vpop.f32.mrf.mxu0
  %291 = vdwg.mxu0
  %v292 = vadd.f32 %v109, %v276
  %v293 = vadd.f32 %v142, %v289
  %v294 = vxor.u32 %v292, 2147483648
  %v295 = vxor.u32 %v293, 2147483648
  %v296 = vmul.f32 %v294, 1.442695
  %v297 = vpow.pop %v296
  %v298 = vmul.f32 %v295, 1.442695
  %v299 = vpow.pop %v298
  %v300 = vadd.f32 %v297, 1.0
  %v301 = vadd.f32 %v299, 1.0
  %v302 = vrcp.pop %v300
  %v303 = vmul.f32 %v300, %v302
  %v304 = vsub.f32 1.0, %v303
  %v305 = vmul.f32 %v302, %v304
  %v306 = vadd.f32 %v302, %v305
  %vm307 = vweird.f32 %v300
  %vm308 = vweird.f32 %v302
  %vm309 = vmor %vm307, %vm308
  %v310 = vsel %vm309, %v302, %v306
  %v311 = vand.u32 2147483647, %v300
  %vm312 = vcmp.eq.f32.partialorder %v311, 8.507059e+37
  %v313 = vand.u32 %v300, 2147483648
  %v314 = vor.u32 1.1754944e-38, %v313
  %v315 = vsel %vm312, %v314, %v310
  %v316 = vmul.f32 1.0, %v315
  %v317 = vrcp.pop %v301
  %v318 = vmul.f32 %v301, %v317
  %v319 = vsub.f32 1.0, %v318
  %v320 = vmul.f32 %v317, %v319
  %v321 = vadd.f32 %v317, %v320
  %vm322 = vweird.f32 %v301
  %vm323 = vweird.f32 %v317
  %vm324 = vmor %vm322, %vm323
  %v325 = vsel %vm324, %v317, %v321
  %v326 = vand.u32 2147483647, %v301
  %vm327 = vcmp.eq.f32.partialorder %v326, 8.507059e+37
  %v328 = vand.u32 %v301, 2147483648
  %v329 = vor.u32 1.1754944e-38, %v328
  %v330 = vsel %vm327, %v329, %v325
  %v331 = vmul.f32 1.0, %v330
  %v332 = vtanh.pop %v293
  %334 = vrot.lane.b32.xlu0 %v220, 64
  %v335 = vpop.permute.xlu0 %334
  %v337 = vmul.f32 %v316, %v335
  %v338 = vmul.f32 %v316, %v332
  %340 = vrot.lane.b32.xlu0 %v338, 64
  %v341 = vpop.permute.xlu0 %340
  %v343 = vadd.f32 %v337, %v341
  %v344 = vtanh.pop %v343
  %v345 = vmul.f32 %v331, %v344
  %v346 = vpack.c.bf16 %v345, %v345
  %348 = vrot.lane.b32.xlu0 %v346, 64
  %v349 = vpop.permute.xlu0 %348
  %v351 = vsel %vm262, %v349, 0
  %353 = vmatpush.bf16.msra.mxu0 0
  %354 = vmatpush.bf16.msra.mxu0 0
  %355 = vmatpush.bf16.msra.mxu0 0
  %356 = vmatpush.bf16.msra.mxu0 0
  %357 = vmatpush.bf16.msra.mxu0 %v252
  %358 = vmatpush.bf16.msra.mxu0 %v250
  %359 = vmatpush.bf16.msra.mxu0 %v248
  %360 = vmatpush.bf16.msra.mxu0 %v246
  %361 = vmatmul.bf16.gmra.mxu0 %v351
  %v362 = vpop.f32.mrf.mxu0
  %v363 = vadd.f32 0.0, %v362
  %v364 = vpop.f32.mrf.mxu0
  %365 = vdwg.mxu0
  %366 = vmatpush.bf16.msra.mxu0 0
  %367 = vmatpush.bf16.msra.mxu0 0
  %368 = vmatpush.bf16.msra.mxu0 0
  %369 = vmatpush.bf16.msra.mxu0 0
  %370 = vmatpush.bf16.msra.mxu0 %v253
  %371 = vmatpush.bf16.msra.mxu0 %v251
  %372 = vmatpush.bf16.msra.mxu0 %v249
  %373 = vmatpush.bf16.msra.mxu0 %v247
  %374 = vmatmul.bf16.gmra.mxu0 %v351
  %v375 = vpop.f32.mrf.mxu0
  %v376 = vadd.f32 0.0, %v375
  %v377 = vpop.f32.mrf.mxu0
  %378 = vdwg.mxu0
  %v379 = vadd.f32 %v112, %v363
  %v380 = vadd.f32 %v145, %v376
  %v381 = vxor.u32 %v379, 2147483648
  %v382 = vxor.u32 %v380, 2147483648
  %v383 = vmul.f32 %v381, 1.442695
  %v384 = vpow.pop %v383
  %v385 = vmul.f32 %v382, 1.442695
  %v386 = vpow.pop %v385
  %v387 = vadd.f32 %v384, 1.0
  %v388 = vadd.f32 %v386, 1.0
  %v389 = vrcp.pop %v387
  %v390 = vmul.f32 %v387, %v389
  %v391 = vsub.f32 1.0, %v390
  %v392 = vmul.f32 %v389, %v391
  %v393 = vadd.f32 %v389, %v392
  %vm394 = vweird.f32 %v387
  %vm395 = vweird.f32 %v389
  %vm396 = vmor %vm394, %vm395
  %v397 = vsel %vm396, %v389, %v393
  %v398 = vand.u32 2147483647, %v387
  %vm399 = vcmp.eq.f32.partialorder %v398, 8.507059e+37
  %v400 = vand.u32 %v387, 2147483648
  %v401 = vor.u32 1.1754944e-38, %v400
  %v402 = vsel %vm399, %v401, %v397
  %v403 = vmul.f32 1.0, %v402
  %v404 = vrcp.pop %v388
  %v405 = vmul.f32 %v388, %v404
  %v406 = vsub.f32 1.0, %v405
  %v407 = vmul.f32 %v404, %v406
  %v408 = vadd.f32 %v404, %v407
  %vm409 = vweird.f32 %v388
  %vm410 = vweird.f32 %v404
  %vm411 = vmor %vm409, %vm410
  %v412 = vsel %vm411, %v404, %v408
  %v413 = vand.u32 2147483647, %v388
  %vm414 = vcmp.eq.f32.partialorder %v413, 8.507059e+37
  %v415 = vand.u32 %v388, 2147483648
  %v416 = vor.u32 1.1754944e-38, %v415
  %v417 = vsel %vm414, %v416, %v412
  %v418 = vmul.f32 1.0, %v417
  %v419 = vtanh.pop %v380
  %v420 = vmul.f32 %v403, %v343
  %v421 = vmul.f32 %v403, %v419
  %423 = vrot.lane.b32.xlu0 %v421, 64
  %v424 = vpop.permute.xlu0 %423
  %v426 = vadd.f32 %v420, %v424
  %v427 = vtanh.pop %v426
  %v428 = vmul.f32 %v418, %v427
  %v429 = vpack.c.bf16 %v428, %v428
  %431 = vrot.lane.b32.xlu0 %v429, 64
  %v432 = vpop.permute.xlu0 %431
  %v434 = vsel %vm262, %v432, 0
  %436 = vmatpush.bf16.msra.mxu0 0
  %437 = vmatpush.bf16.msra.mxu0 0
  %438 = vmatpush.bf16.msra.mxu0 0
  %439 = vmatpush.bf16.msra.mxu0 0
  %440 = vmatpush.bf16.msra.mxu0 %v252
  %441 = vmatpush.bf16.msra.mxu0 %v250
  %442 = vmatpush.bf16.msra.mxu0 %v248
  %443 = vmatpush.bf16.msra.mxu0 %v246
  %444 = vmatmul.bf16.gmra.mxu0 %v434
  %v445 = vpop.f32.mrf.mxu0
  %v446 = vadd.f32 0.0, %v445
  %v447 = vpop.f32.mrf.mxu0
  %448 = vdwg.mxu0
  %449 = vmatpush.bf16.msra.mxu0 0
  %450 = vmatpush.bf16.msra.mxu0 0
  %451 = vmatpush.bf16.msra.mxu0 0
  %452 = vmatpush.bf16.msra.mxu0 0
  %453 = vmatpush.bf16.msra.mxu0 %v253
  %454 = vmatpush.bf16.msra.mxu0 %v251
  %455 = vmatpush.bf16.msra.mxu0 %v249
  %456 = vmatpush.bf16.msra.mxu0 %v247
  %457 = vmatmul.bf16.gmra.mxu0 %v434
  %v458 = vpop.f32.mrf.mxu0
  %v459 = vadd.f32 0.0, %v458
  %v460 = vpop.f32.mrf.mxu0
  %461 = vdwg.mxu0
  %v462 = vadd.f32 %v114, %v446
  %v463 = vadd.f32 %v147, %v459
  %v464 = vxor.u32 %v462, 2147483648
  %v465 = vxor.u32 %v463, 2147483648
  %v466 = vmul.f32 %v464, 1.442695
  %v467 = vpow.pop %v466
  %v468 = vmul.f32 %v465, 1.442695
  %v469 = vpow.pop %v468
  %v470 = vadd.f32 %v467, 1.0
  %v471 = vadd.f32 %v469, 1.0
  %v472 = vrcp.pop %v470
  %v473 = vmul.f32 %v470, %v472
  %v474 = vsub.f32 1.0, %v473
  %v475 = vmul.f32 %v472, %v474
  %v476 = vadd.f32 %v472, %v475
  %vm477 = vweird.f32 %v470
  %vm478 = vweird.f32 %v472
  %vm479 = vmor %vm477, %vm478
  %v480 = vsel %vm479, %v472, %v476
  %v481 = vand.u32 2147483647, %v470
  %vm482 = vcmp.eq.f32.partialorder %v481, 8.507059e+37
  %v483 = vand.u32 %v470, 2147483648
  %v484 = vor.u32 1.1754944e-38, %v483
  %v485 = vsel %vm482, %v484, %v480
  %v486 = vmul.f32 1.0, %v485
  %v487 = vrcp.pop %v471
  %v488 = vmul.f32 %v471, %v487
  %v489 = vsub.f32 1.0, %v488
  %v490 = vmul.f32 %v487, %v489
  %v491 = vadd.f32 %v487, %v490
  %vm492 = vweird.f32 %v471
  %vm493 = vweird.f32 %v487
  %vm494 = vmor %vm492, %vm493
  %v495 = vsel %vm494, %v487, %v491
  %v496 = vand.u32 2147483647, %v471
  %vm497 = vcmp.eq.f32.partialorder %v496, 8.507059e+37
  %v498 = vand.u32 %v471, 2147483648
  %v499 = vor.u32 1.1754944e-38, %v498
  %v500 = vsel %vm497, %v499, %v495
  %v501 = vmul.f32 1.0, %v500
  %v502 = vtanh.pop %v463
  %v503 = vmul.f32 %v486, %v426
  %v504 = vmul.f32 %v486, %v502
  %506 = vrot.lane.b32.xlu0 %v504, 64
  %v507 = vpop.permute.xlu0 %506
  %v509 = vadd.f32 %v503, %v507
  %v510 = vtanh.pop %v509
  %v511 = vmul.f32 %v501, %v510
  %v512 = vpack.c.bf16 %v511, %v511
  %514 = vrot.lane.b32.xlu0 %v512, 64
  %v515 = vpop.permute.xlu0 %514
  %v517 = vsel %vm262, %v515, 0
  %519 = vmatpush.bf16.msra.mxu0 0
  %520 = vmatpush.bf16.msra.mxu0 0
  %521 = vmatpush.bf16.msra.mxu0 0
  %522 = vmatpush.bf16.msra.mxu0 0
  %523 = vmatpush.bf16.msra.mxu0 %v252
  %524 = vmatpush.bf16.msra.mxu0 %v250
  %525 = vmatpush.bf16.msra.mxu0 %v248
  %526 = vmatpush.bf16.msra.mxu0 %v246
  %527 = vmatmul.bf16.gmra.mxu0 %v517
  %v528 = vpop.f32.mrf.mxu0
  %v529 = vadd.f32 0.0, %v528
  %v530 = vpop.f32.mrf.mxu0
  %531 = vdwg.mxu0
  %532 = vmatpush.bf16.msra.mxu0 0
  %533 = vmatpush.bf16.msra.mxu0 0
  %534 = vmatpush.bf16.msra.mxu0 0
  %535 = vmatpush.bf16.msra.mxu0 0
  %536 = vmatpush.bf16.msra.mxu0 %v253
  %537 = vmatpush.bf16.msra.mxu0 %v251
  %538 = vmatpush.bf16.msra.mxu0 %v249
  %539 = vmatpush.bf16.msra.mxu0 %v247
  %540 = vmatmul.bf16.gmra.mxu0 %v517
  %v541 = vpop.f32.mrf.mxu0
  %v542 = vadd.f32 0.0, %v541
  %v543 = vpop.f32.mrf.mxu0
  %544 = vdwg.mxu0
  %v545 = vadd.f32 %v117, %v529
  %v546 = vadd.f32 %v150, %v542
  %v547 = vxor.u32 %v545, 2147483648
  %v548 = vxor.u32 %v546, 2147483648
  %v549 = vmul.f32 %v547, 1.442695
  %v550 = vpow.pop %v549
  %v551 = vmul.f32 %v548, 1.442695
  %v552 = vpow.pop %v551
  %v553 = vadd.f32 %v550, 1.0
  %v554 = vadd.f32 %v552, 1.0
  %v555 = vrcp.pop %v553
  %v556 = vmul.f32 %v553, %v555
  %v557 = vsub.f32 1.0, %v556
  %v558 = vmul.f32 %v555, %v557
  %v559 = vadd.f32 %v555, %v558
  %vm560 = vweird.f32 %v553
  %vm561 = vweird.f32 %v555
  %vm562 = vmor %vm560, %vm561
  %v563 = vsel %vm562, %v555, %v559
  %v564 = vand.u32 2147483647, %v553
  %vm565 = vcmp.eq.f32.partialorder %v564, 8.507059e+37
  %v566 = vand.u32 %v553, 2147483648
  %v567 = vor.u32 1.1754944e-38, %v566
  %v568 = vsel %vm565, %v567, %v563
  %v569 = vmul.f32 1.0, %v568
  %v570 = vrcp.pop %v554
  %v571 = vmul.f32 %v554, %v570
  %v572 = vsub.f32 1.0, %v571
  %v573 = vmul.f32 %v570, %v572
  %v574 = vadd.f32 %v570, %v573
  %vm575 = vweird.f32 %v554
  %vm576 = vweird.f32 %v570
  %vm577 = vmor %vm575, %vm576
  %v578 = vsel %vm577, %v570, %v574
  %v579 = vand.u32 2147483647, %v554
  %vm580 = vcmp.eq.f32.partialorder %v579, 8.507059e+37
  %v581 = vand.u32 %v554, 2147483648
  %v582 = vor.u32 1.1754944e-38, %v581
  %v583 = vsel %vm580, %v582, %v578
  %v584 = vmul.f32 1.0, %v583
  %v585 = vtanh.pop %v546
  %v586 = vmul.f32 %v569, %v509
  %v587 = vmul.f32 %v569, %v585
  %589 = vrot.lane.b32.xlu0 %v587, 64
  %v590 = vpop.permute.xlu0 %589
  %v592 = vadd.f32 %v586, %v590
  %v593 = vtanh.pop %v592
  %v594 = vmul.f32 %v584, %v593
  %v595 = vpack.c.bf16 %v594, %v594
  %597 = vrot.lane.b32.xlu0 %v595, 64
  %v598 = vpop.permute.xlu0 %597
  %v600 = vsel %vm262, %v598, 0
  %602 = vmatpush.bf16.msra.mxu0 0
  %603 = vmatpush.bf16.msra.mxu0 0
  %604 = vmatpush.bf16.msra.mxu0 0
  %605 = vmatpush.bf16.msra.mxu0 0
  %606 = vmatpush.bf16.msra.mxu0 %v252
  %607 = vmatpush.bf16.msra.mxu0 %v250
  %608 = vmatpush.bf16.msra.mxu0 %v248
  %609 = vmatpush.bf16.msra.mxu0 %v246
  %610 = vmatmul.bf16.gmra.mxu0 %v600
  %v611 = vpop.f32.mrf.mxu0
  %v612 = vadd.f32 0.0, %v611
  %v613 = vpop.f32.mrf.mxu0
  %614 = vdwg.mxu0
  %615 = vmatpush.bf16.msra.mxu0 0
  %616 = vmatpush.bf16.msra.mxu0 0
  %617 = vmatpush.bf16.msra.mxu0 0
  %618 = vmatpush.bf16.msra.mxu0 0
  %619 = vmatpush.bf16.msra.mxu0 %v253
  %620 = vmatpush.bf16.msra.mxu0 %v251
  %621 = vmatpush.bf16.msra.mxu0 %v249
  %622 = vmatpush.bf16.msra.mxu0 %v247
  %623 = vmatmul.bf16.gmra.mxu0 %v600
  %v624 = vpop.f32.mrf.mxu0
  %v625 = vadd.f32 0.0, %v624
  %v626 = vpop.f32.mrf.mxu0
  %627 = vdwg.mxu0
  %v628 = vadd.f32 %v119, %v612
  %v629 = vadd.f32 %v152, %v625
  %v630 = vxor.u32 %v628, 2147483648
  %v631 = vxor.u32 %v629, 2147483648
  %v632 = vmul.f32 %v630, 1.442695
  %v633 = vpow.pop %v632
  %v634 = vmul.f32 %v631, 1.442695
  %v635 = vpow.pop %v634
  %v636 = vadd.f32 %v633, 1.0
  %v637 = vadd.f32 %v635, 1.0
  %v638 = vrcp.pop %v636
  %v639 = vmul.f32 %v636, %v638
  %v640 = vsub.f32 1.0, %v639
  %v641 = vmul.f32 %v638, %v640
  %v642 = vadd.f32 %v638, %v641
  %vm643 = vweird.f32 %v636
  %vm644 = vweird.f32 %v638
  %vm645 = vmor %vm643, %vm644
  %v646 = vsel %vm645, %v638, %v642
  %v647 = vand.u32 2147483647, %v636
  %vm648 = vcmp.eq.f32.partialorder %v647, 8.507059e+37
  %v649 = vand.u32 %v636, 2147483648
  %v650 = vor.u32 1.1754944e-38, %v649
  %v651 = vsel %vm648, %v650, %v646
  %v652 = vmul.f32 1.0, %v651
  %v653 = vrcp.pop %v637
  %v654 = vmul.f32 %v637, %v653
  %v655 = vsub.f32 1.0, %v654
  %v656 = vmul.f32 %v653, %v655
  %v657 = vadd.f32 %v653, %v656
  %vm658 = vweird.f32 %v637
  %vm659 = vweird.f32 %v653
  %vm660 = vmor %vm658, %vm659
  %v661 = vsel %vm660, %v653, %v657
  %v662 = vand.u32 2147483647, %v637
  %vm663 = vcmp.eq.f32.partialorder %v662, 8.507059e+37
  %v664 = vand.u32 %v637, 2147483648
  %v665 = vor.u32 1.1754944e-38, %v664
  %v666 = vsel %vm663, %v665, %v661
  %v667 = vmul.f32 1.0, %v666
  %v668 = vtanh.pop %v629
  %v669 = vmul.f32 %v652, %v592
  %v670 = vmul.f32 %v652, %v668
  %672 = vrot.lane.b32.xlu0 %v670, 64
  %v673 = vpop.permute.xlu0 %672
  %v675 = vadd.f32 %v669, %v673
  %v676 = vtanh.pop %v675
  %v677 = vmul.f32 %v667, %v676
  %v678 = vpack.c.bf16 %v677, %v677
  %680 = vrot.lane.b32.xlu0 %v678, 64
  %v681 = vpop.permute.xlu0 %680
  %v683 = vsel %vm262, %v681, 0
  %685 = vmatpush.bf16.msra.mxu0 0
  %686 = vmatpush.bf16.msra.mxu0 0
  %687 = vmatpush.bf16.msra.mxu0 0
  %688 = vmatpush.bf16.msra.mxu0 0
  %689 = vmatpush.bf16.msra.mxu0 %v252
  %690 = vmatpush.bf16.msra.mxu0 %v250
  %691 = vmatpush.bf16.msra.mxu0 %v248
  %692 = vmatpush.bf16.msra.mxu0 %v246
  %693 = vmatmul.bf16.gmra.mxu0 %v683
  %v694 = vpop.f32.mrf.mxu0
  %v695 = vadd.f32 0.0, %v694
  %v696 = vpop.f32.mrf.mxu0
  %697 = vdwg.mxu0
  %698 = vmatpush.bf16.msra.mxu0 0
  %699 = vmatpush.bf16.msra.mxu0 0
  %700 = vmatpush.bf16.msra.mxu0 0
  %701 = vmatpush.bf16.msra.mxu0 0
  %702 = vmatpush.bf16.msra.mxu0 %v253
  %703 = vmatpush.bf16.msra.mxu0 %v251
  %704 = vmatpush.bf16.msra.mxu0 %v249
  %705 = vmatpush.bf16.msra.mxu0 %v247
  %706 = vmatmul.bf16.gmra.mxu0 %v683
  %v707 = vpop.f32.mrf.mxu0
  %v708 = vadd.f32 0.0, %v707
  %v709 = vpop.f32.mrf.mxu0
  %710 = vdwg.mxu0
  %v711 = vadd.f32 %v122, %v695
  %v712 = vadd.f32 %v155, %v708
  %v713 = vxor.u32 %v711, 2147483648
  %v714 = vxor.u32 %v712, 2147483648
  %v715 = vmul.f32 %v713, 1.442695
  %v716 = vpow.pop %v715
  %v717 = vmul.f32 %v714, 1.442695
  %v718 = vpow.pop %v717
  %v719 = vadd.f32 %v716, 1.0
  %v720 = vadd.f32 %v718, 1.0
  %v721 = vrcp.pop %v719
  %v722 = vmul.f32 %v719, %v721
  %v723 = vsub.f32 1.0, %v722
  %v724 = vmul.f32 %v721, %v723
  %v725 = vadd.f32 %v721, %v724
  %vm726 = vweird.f32 %v719
  %vm727 = vweird.f32 %v721
  %vm728 = vmor %vm726, %vm727
  %v729 = vsel %vm728, %v721, %v725
  %v730 = vand.u32 2147483647, %v719
  %vm731 = vcmp.eq.f32.partialorder %v730, 8.507059e+37
  %v732 = vand.u32 %v719, 2147483648
  %v733 = vor.u32 1.1754944e-38, %v732
  %v734 = vsel %vm731, %v733, %v729
  %v735 = vmul.f32 1.0, %v734
  %v736 = vrcp.pop %v720
  %v737 = vmul.f32 %v720, %v736
  %v738 = vsub.f32 1.0, %v737
  %v739 = vmul.f32 %v736, %v738
  %v740 = vadd.f32 %v736, %v739
  %vm741 = vweird.f32 %v720
  %vm742 = vweird.f32 %v736
  %vm743 = vmor %vm741, %vm742
  %v744 = vsel %vm743, %v736, %v740
  %v745 = vand.u32 2147483647, %v720
  %vm746 = vcmp.eq.f32.partialorder %v745, 8.507059e+37
  %v747 = vand.u32 %v720, 2147483648
  %v748 = vor.u32 1.1754944e-38, %v747
  %v749 = vsel %vm746, %v748, %v744
  %v750 = vmul.f32 1.0, %v749
  %v751 = vtanh.pop %v712
  %v752 = vmul.f32 %v735, %v675
  %v753 = vmul.f32 %v735, %v751
  %755 = vrot.lane.b32.xlu0 %v753, 64
  %v756 = vpop.permute.xlu0 %755
  %v758 = vadd.f32 %v752, %v756
  %v759 = vtanh.pop %v758
  %v760 = vmul.f32 %v750, %v759
  %v761 = vpack.c.bf16 %v760, %v760
  %763 = vrot.lane.b32.xlu0 %v761, 64
  %v764 = vpop.permute.xlu0 %763
  %v766 = vsel %vm262, %v764, 0
  %768 = vmatpush.bf16.msra.mxu0 0
  %769 = vmatpush.bf16.msra.mxu0 0
  %770 = vmatpush.bf16.msra.mxu0 0
  %771 = vmatpush.bf16.msra.mxu0 0
  %772 = vmatpush.bf16.msra.mxu0 %v252
  %773 = vmatpush.bf16.msra.mxu0 %v250
  %774 = vmatpush.bf16.msra.mxu0 %v248
  %775 = vmatpush.bf16.msra.mxu0 %v246
  %776 = vmatmul.bf16.gmra.mxu0 %v766
  %v777 = vpop.f32.mrf.mxu0
  %v778 = vadd.f32 0.0, %v777
  %v779 = vpop.f32.mrf.mxu0
  %780 = vdwg.mxu0
  %781 = vmatpush.bf16.msra.mxu0 0
  %782 = vmatpush.bf16.msra.mxu0 0
  %783 = vmatpush.bf16.msra.mxu0 0
  %784 = vmatpush.bf16.msra.mxu0 0
  %785 = vmatpush.bf16.msra.mxu0 %v253
  %786 = vmatpush.bf16.msra.mxu0 %v251
  %787 = vmatpush.bf16.msra.mxu0 %v249
  %788 = vmatpush.bf16.msra.mxu0 %v247
  %789 = vmatmul.bf16.gmra.mxu0 %v766
  %v790 = vpop.f32.mrf.mxu0
  %v791 = vadd.f32 0.0, %v790
  %v792 = vpop.f32.mrf.mxu0
  %793 = vdwg.mxu0
  %v794 = vadd.f32 %v124, %v778
  %v795 = vadd.f32 %v157, %v791
  %v796 = vxor.u32 %v794, 2147483648
  %v797 = vxor.u32 %v795, 2147483648
  %v798 = vmul.f32 %v796, 1.442695
  %v799 = vpow.pop %v798
  %v800 = vmul.f32 %v797, 1.442695
  %v801 = vpow.pop %v800
  %v802 = vadd.f32 %v799, 1.0
  %v803 = vadd.f32 %v801, 1.0
  %v804 = vrcp.pop %v802
  %v805 = vmul.f32 %v802, %v804
  %v806 = vsub.f32 1.0, %v805
  %v807 = vmul.f32 %v804, %v806
  %v808 = vadd.f32 %v804, %v807
  %vm809 = vweird.f32 %v802
  %vm810 = vweird.f32 %v804
  %vm811 = vmor %vm809, %vm810
  %v812 = vsel %vm811, %v804, %v808
  %v813 = vand.u32 2147483647, %v802
  %vm814 = vcmp.eq.f32.partialorder %v813, 8.507059e+37
  %v815 = vand.u32 %v802, 2147483648
  %v816 = vor.u32 1.1754944e-38, %v815
  %v817 = vsel %vm814, %v816, %v812
  %v818 = vmul.f32 1.0, %v817
  %v819 = vrcp.pop %v803
  %v820 = vmul.f32 %v803, %v819
  %v821 = vsub.f32 1.0, %v820
  %v822 = vmul.f32 %v819, %v821
  %v823 = vadd.f32 %v819, %v822
  %vm824 = vweird.f32 %v803
  %vm825 = vweird.f32 %v819
  %vm826 = vmor %vm824, %vm825
  %v827 = vsel %vm826, %v819, %v823
  %v828 = vand.u32 2147483647, %v803
  %vm829 = vcmp.eq.f32.partialorder %v828, 8.507059e+37
  %v830 = vand.u32 %v803, 2147483648
  %v831 = vor.u32 1.1754944e-38, %v830
  %v832 = vsel %vm829, %v831, %v827
  %v833 = vmul.f32 1.0, %v832
  %v834 = vtanh.pop %v795
  %v835 = vmul.f32 %v818, %v758
  %v836 = vmul.f32 %v818, %v834
  %838 = vrot.lane.b32.xlu0 %v836, 64
  %v839 = vpop.permute.xlu0 %838
  %v841 = vadd.f32 %v835, %v839
  %v842 = vtanh.pop %v841
  %v843 = vmul.f32 %v833, %v842
  %v844 = vpack.c.bf16 %v843, %v843
  %846 = vrot.lane.b32.xlu0 %v844, 64
  %v847 = vpop.permute.xlu0 %846
  %v849 = vsel %vm262, %v847, 0
  %851 = vmatpush.bf16.msra.mxu0 0
  %852 = vmatpush.bf16.msra.mxu0 0
  %853 = vmatpush.bf16.msra.mxu0 0
  %854 = vmatpush.bf16.msra.mxu0 0
  %855 = vmatpush.bf16.msra.mxu0 %v252
  %856 = vmatpush.bf16.msra.mxu0 %v250
  %857 = vmatpush.bf16.msra.mxu0 %v248
  %858 = vmatpush.bf16.msra.mxu0 %v246
  %859 = vmatmul.bf16.gmra.mxu0 %v849
  %v860 = vpop.f32.mrf.mxu0
  %v861 = vadd.f32 0.0, %v860
  %v862 = vpop.f32.mrf.mxu0
  %863 = vdwg.mxu0
  %864 = vmatpush.bf16.msra.mxu0 0
  %865 = vmatpush.bf16.msra.mxu0 0
  %866 = vmatpush.bf16.msra.mxu0 0
  %867 = vmatpush.bf16.msra.mxu0 0
  %868 = vmatpush.bf16.msra.mxu0 %v253
  %869 = vmatpush.bf16.msra.mxu0 %v251
  %870 = vmatpush.bf16.msra.mxu0 %v249
  %871 = vmatpush.bf16.msra.mxu0 %v247
  %872 = vmatmul.bf16.gmra.mxu0 %v849
  %v873 = vpop.f32.mrf.mxu0
  %v874 = vadd.f32 0.0, %v873
  %v875 = vpop.f32.mrf.mxu0
  %876 = vdwg.mxu0
  %v877 = vadd.f32 %v127, %v861
  %v878 = vadd.f32 %v160, %v874
  %v879 = vxor.u32 %v877, 2147483648
  %v880 = vxor.u32 %v878, 2147483648
  %v881 = vmul.f32 %v879, 1.442695
  %v882 = vpow.pop %v881
  %v883 = vmul.f32 %v880, 1.442695
  %v884 = vpow.pop %v883
  %v885 = vadd.f32 %v882, 1.0
  %v886 = vadd.f32 %v884, 1.0
  %v887 = vrcp.pop %v885
  %v888 = vmul.f32 %v885, %v887
  %v889 = vsub.f32 1.0, %v888
  %v890 = vmul.f32 %v887, %v889
  %v891 = vadd.f32 %v887, %v890
  %vm892 = vweird.f32 %v885
  %vm893 = vweird.f32 %v887
  %vm894 = vmor %vm892, %vm893
  %v895 = vsel %vm894, %v887, %v891
  %v896 = vand.u32 2147483647, %v885
  %vm897 = vcmp.eq.f32.partialorder %v896, 8.507059e+37
  %v898 = vand.u32 %v885, 2147483648
  %v899 = vor.u32 1.1754944e-38, %v898
  %v900 = vsel %vm897, %v899, %v895
  %v901 = vmul.f32 1.0, %v900
  %v902 = vrcp.pop %v886
  %v903 = vmul.f32 %v886, %v902
  %v904 = vsub.f32 1.0, %v903
  %v905 = vmul.f32 %v902, %v904
  %v906 = vadd.f32 %v902, %v905
  %vm907 = vweird.f32 %v886
  %vm908 = vweird.f32 %v902
  %vm909 = vmor %vm907, %vm908
  %v910 = vsel %vm909, %v902, %v906
  %v911 = vand.u32 2147483647, %v886
  %vm912 = vcmp.eq.f32.partialorder %v911, 8.507059e+37
  %v913 = vand.u32 %v886, 2147483648
  %v914 = vor.u32 1.1754944e-38, %v913
  %v915 = vsel %vm912, %v914, %v910
  %v916 = vmul.f32 1.0, %v915
  %v917 = vtanh.pop %v878
  %v918 = vmul.f32 %v901, %v841
  %v919 = vmul.f32 %v901, %v917
  %921 = vrot.lane.b32.xlu0 %v919, 64
  %v922 = vpop.permute.xlu0 %921
  %v924 = vadd.f32 %v918, %v922
  %v925 = vtanh.pop %v924
  %v926 = vmul.f32 %v916, %v925
  %v927 = vpack.c.bf16 %v926, %v926
  %v928 = vld [vmem:[%s4] sm:$0xf]
  %v929 = vld [vmem:[%s4 + $0x4] sm:$0xf]
  %v930 = vld [vmem:[%s4 + $0x8] sm:$0xf]
  %v931 = vld [vmem:[%s4 + $0xc] sm:$0xf]
  %v932 = vld [vmem:[%s5] sm:$0x1]
  %v934 = vperm.slane %v932, 0
  %937 = vrot.lane.b32.xlu0 %v927, 32
  %v938 = vpop.permute.xlu0 %937
  %v943 = vunpack.c.l.b16 %v928
  %v944 = vunpack.c.l.b16 %v929
  %v945 = vunpack.c.l.b16 %v930
  %v946 = vunpack.c.l.b16 %v931
  %v947 = vpack.c.b16 %v944, %v943
  %v948 = vpack.c.b16 %v946, %v945
  %vm951 = vcmask 261120
  %v953 = vsel %vm951, %v938, 0
  %955 = vmatpush.bf16.msra.mxu0 0
  %956 = vmatpush.bf16.msra.mxu0 0
  %957 = vmatpush.bf16.msra.mxu0 0
  %958 = vmatpush.bf16.msra.mxu0 0
  %959 = vmatpush.bf16.msra.mxu0 0
  %960 = vmatpush.bf16.msra.mxu0 0
  %961 = vmatpush.bf16.msra.mxu0 %v948
  %962 = vmatpush.bf16.msra.mxu0 %v947
  %963 = vmatmul.bf16.gmra.mxu0 %v953
  %v964 = vpop.f32.mrf.mxu0
  %v965 = vadd.f32 %v934, %v964
  %v966 = vpop.f32.mrf.mxu0
  %967 = vdwg.mxu0
  %v968 = vmax.f32 %v965, 0.0
  %v969 = vpack.c.bf16 %v968, %v968
  %v970 = vld [vmem:[%s6] sm:$0xf]
  %v971 = vld [vmem:[%s6 + $0x4] sm:$0xf]
  %v972 = vld [vmem:[%s6 + $0x8] sm:$0xf]
  %v973 = vld [vmem:[%s6 + $0xc] sm:$0xf]
  %v974 = vld [vmem:[%s7] sm:$0x1]
  %v976 = vperm.slane %v974, 0
  %v982 = vunpack.c.l.b16 %v970
  %v983 = vunpack.c.l.b16 %v971
  %v984 = vunpack.c.l.b16 %v972
  %v985 = vunpack.c.l.b16 %v973
  %v986 = vpack.c.b16 %v983, %v982
  %v987 = vpack.c.b16 %v985, %v984
  %v991 = vsel %vm951, %v969, 0
  %993 = vmatpush.bf16.msra.mxu0 0
  %994 = vmatpush.bf16.msra.mxu0 0
  %995 = vmatpush.bf16.msra.mxu0 0
  %996 = vmatpush.bf16.msra.mxu0 0
  %997 = vmatpush.bf16.msra.mxu0 0
  %998 = vmatpush.bf16.msra.mxu0 0
  %999 = vmatpush.bf16.msra.mxu0 %v987
  %1000 = vmatpush.bf16.msra.mxu0 %v986
  %1001 = vmatmul.bf16.gmra.mxu0 %v991
  %v1002 = vpop.f32.mrf.mxu0
  %v1003 = vadd.f32 %v976, %v1002
  %v1004 = vpop.f32.mrf.mxu0
  %1005 = vdwg.mxu0
  %vm1006 = vcmask 31744
  %1007 = vst.msk [vmem:[%s8] sm:$0xff] %vm1006, %v1003
  // Predicated region
  $region34: #{lstm_forward.1} parent=0 // pred_check
    _
  $region35: #{lstm_forward.1} parent=0 // pred_check_branch
    %1009 = sbr.rel (0) target = $region37
  $region36: #{lstm_forward.1} parent=0 // pred_region
    _
  $region37: #{lstm_forward.1} parent=0 // pred_fallthru
    _
  // Predicated region
  $region38: #{lstm_forward.1} parent=0 // pred_check
    _
  $region39: #{lstm_forward.1} parent=0 // pred_check_branch
    %1011 = sbr.rel (0) target = $region41
  $region40: #{lstm_forward.1} parent=0 // pred_region
    _
  $region41: #{lstm_forward.1} parent=0 // pred_fallthru
    _

</llo_original>
